<compile_context>
chip_gen: v6e
topology: v6e:2x2x1
jax: 0.10.0
libtpu: 0.0.40
codegen_flags: <defaults>
</compile_context>

<pallas_src>
import functools
import math

import numpy as np
import jax
import jax.numpy as jnp
from jax.experimental import pallas as pl
from jax.experimental.pallas import tpu as pltpu


def _round_up(a, b):
    return ((a + b - 1) // b) * b


CHUNK_LANES = 2048  # lane-chunk per dot: bounds lhs (~K*chunk*4B) and acc vregs


# ----------------------------------------------------------------------------
# Fused conv kernel: per image, build the tap-concatenated lhs (C8*KK, chunk)
# from statically shifted lane slices and do ONE MXU dot against the resident
# (OC8, C8*KK) weight.  Channels live on sublanes, spatial on lanes.
# ----------------------------------------------------------------------------
def _fused_conv_kernel(x_ref, w_ref, o_ref, *, block_n, offsets, s_pad, chunk):
    # x_ref: (block_n, C8, P_pad)   channels on sublanes, spatial (+zero tail) on lanes
    # w_ref: (OC8, KK*C8)           tap-concatenated weight, resident across the grid
    # o_ref: (block_n, OC8, S_pad)  channel-major output, lane-dense stores
    w = w_ref[...]                                     # hoisted: loaded once per step
    for n in range(block_n):                           # static unroll over images
        for s0 in range(0, s_pad, chunk):              # static unroll over lane chunks
            cs = min(chunk, s_pad - s0)
            # k_h*k_w statically shifted lane slices, stacked on sublanes -> fused K.
            taps = [x_ref[n, :, s0 + off:s0 + off + cs] for off in offsets]
            lhs = jnp.concatenate(taps, axis=0)        # (KK*C8, cs)
            o_ref[n, :, s0:s0 + cs] = jnp.dot(
                w, lhs, preferred_element_type=jnp.float32).astype(o_ref.dtype)


def fused_masked_conv(x_v, w_cat, *, block_n, offsets, s_pad, chunk):
    """x_v: (Np, C8, P_pad) f32, w_cat: (OC8, KK*C8) f32 -> (Np, OC8, S_pad) f32."""
    n_pad, c8, p_pad = x_v.shape
    oc8, kkc8 = w_cat.shape
    grid_n = n_pad // block_n

    kernel = functools.partial(_fused_conv_kernel, block_n=block_n,
                               offsets=offsets, s_pad=s_pad, chunk=chunk)
    return pl.pallas_call(
        kernel,
        out_shape=jax.ShapeDtypeStruct((n_pad, oc8, s_pad), jnp.float32),
        grid_spec=pltpu.PrefetchScalarGridSpec(
            num_scalar_prefetch=0,
            grid=(grid_n,),                                      # block_n images / step
            in_specs=[
                pl.BlockSpec((block_n, c8, p_pad), lambda nb: (nb, 0, 0)),
                pl.BlockSpec((oc8, kkc8), lambda nb: (0, 0)),    # resident weight
            ],
            out_specs=pl.BlockSpec((block_n, oc8, s_pad), lambda nb: (nb, 0, 0)),
        ),
        compiler_params=pltpu.CompilerParams(
            dimension_semantics=("parallel",),
            vmem_limit_bytes=48 * 1024 * 1024),
    )(x_v, w_cat)


# ----------------------------------------------------------------------------
# Forward glue (jitted): build the torch as_strided "view" (identity for the
# padding=0 / stride=1 hot path), call the kernel, slice away padding.
# ----------------------------------------------------------------------------
def _forward_impl(x, w_cat, *, k_h, k_w, stride, padding, out_c):
    N, C, H, W = x.shape
    out_h = (H + 2 * padding - k_h) // stride + 1
    out_w = (W + 2 * padding - k_w) // stride + 1
    v_h = out_h + k_h - 1
    v_w = out_w + k_w - 1

    c8 = _round_up(C, 8)
    oc8 = w_cat.shape[0]
    offsets = tuple(kh * v_w + kw for kh in range(k_h) for kw in range(k_w))
    s_pad = _round_up(out_h * v_w, 128)                  # lane-dense output rows
    p_pad = _round_up(s_pad + offsets[-1], 128)          # every shifted read in bounds
    block_n = max(1, min(N, 8))                          # images per grid step
    n_pad = _round_up(N, block_n)
    chunk = min(s_pad, CHUNK_LANES)

    # Strided view V[n,c,h',w'] = padded_flat[n*C*H*W + c*H*W + h'*W*s + w'*s]
    # (torch uses UNPADDED strides against the padded buffer).
    if padding == 0 and stride == 1:
        v = x.reshape(N, C, v_h * v_w)     # the as_strided view IS the input (no copy)
    else:
        # TODO(synk): faithful gather fallback -- for padding>0 / stride>1 torch's
        # as_strided indexing is not a true convolution and cannot be expressed as
        # plain shifted slices; this path reproduces it bit-for-bit (off hot path).
        img = jnp.pad(x, ((0, 0), (0, 0), (padding, padding), (padding, padding)))
        flat = img.reshape(-1)
        n_i = jnp.arange(N).reshape(N, 1, 1, 1)
        c_i = jnp.arange(C).reshape(1, C, 1, 1)
        h_i = jnp.arange(v_h).reshape(1, 1, v_h, 1)
        w_i = jnp.arange(v_w).reshape(1, 1, 1, v_w)
        idx = (n_i * C * H * W + c_i * H * W
               + h_i * W * stride + w_i * stride)
        v = flat[idx].reshape(N, C, v_h * v_w)

    # Pad channels to a sublane multiple, spatial tail with zeros, batch to block_n.
    x_v = jnp.pad(v, ((0, n_pad - N), (0, c8 - C), (0, p_pad - v_h * v_w)))

    out_p = fused_masked_conv(x_v, w_cat, block_n=block_n, offsets=offsets,
                              s_pad=s_pad, chunk=chunk)

    # Output is already channel-major: drop batch/channel padding and the
    # (v_w - out_w) garbage columns -> NCHW, no transpose needed.
    conv = out_p[:N, :out_c, :out_h * v_w].reshape(N, out_c, out_h, v_w)
    return conv[:, :, :, :out_w]


# ----------------------------------------------------------------------------
# MaskedConv2d module (parameters built deterministically in-script)
# ----------------------------------------------------------------------------
class MaskedConv2dPallas:
    def __init__(self, in_c, out_c, kernel_size, stride=1, padding=0, bias=True,
                 key=jax.random.PRNGKey(0)):
        self.in_channels = in_c
        self.out_channels = out_c
        self.kernel_size = kernel_size
        self.stride = stride
        self.padding = padding

        k_h, k_w = kernel_size
        fan_in = in_c * k_h * k_w
        bound = 1.0 / math.sqrt(fan_in)          # kaiming_uniform_(a=sqrt(5)) bound

        wkey, bkey = jax.random.split(key)
        weight = jax.random.uniform(wkey, (out_c, in_c, k_h, k_w), jnp.float32,
                                    minval=-bound, maxval=bound)
        # bias / threshold exist on the module but forward() never applies them.
        self.bias = (jax.random.uniform(bkey, (out_c,), jnp.float32,
                                        minval=-bound, maxval=bound) if bias else None)
        self.threshold = jnp.zeros((1,), jnp.float32)

        # reinit_weight() with the default all-ones mask: boolmask (all True),
        # column selection (identity) and transpose -> (K_masked, out_c)
        mask = np.ones((in_c, k_h, k_w), np.float32)
        self.boolmask = mask.reshape(-1) > 0.0
        idx = np.nonzero(mask.reshape(-1))[0]
        weight_tile = weight.reshape(out_c, in_c * k_h * k_w)
        self.weight = weight_tile[:, idx].T                        # (K_masked, out_c)

        # Kernel-side fused weight: scatter masked columns back into the dense
        # (C*KK, OC) matrix (identity for the all-ones mask), regroup K as
        # [tap-major, channel-minor], pad C->8 sublanes and OC->8 sublanes, and
        # pre-concatenate all taps -> a single (OC8, KK*C8) matrix so the kernel
        # issues ONE dot per chunk instead of KK small ones.
        kk = k_h * k_w
        c8 = _round_up(in_c, 8)
        oc8 = _round_up(out_c, 8)
        w_dense = jnp.zeros((in_c * kk, out_c), jnp.float32).at[idx].set(self.weight)
        w_t = w_dense.reshape(in_c, kk, out_c).transpose(1, 0, 2)   # (KK, C, OC)
        w_t = jnp.pad(w_t, ((0, 0), (0, c8 - in_c), (0, oc8 - out_c)))
        self.w_cat = w_t.reshape(kk * c8, oc8).T                    # (OC8, KK*C8)

        self._forward = jax.jit(functools.partial(
            _forward_impl, k_h=k_h, k_w=k_w, stride=stride, padding=padding,
            out_c=out_c))

    def __call__(self, x):
        return self._forward(x, self.w_cat)


# ----------------------------------------------------------------------------
# Plain-JAX reference of the exact torch math (used only for the check below).
# ----------------------------------------------------------------------------
def _torch_style_im2col_ref(x, k_h, k_w, stride, padding):
    N, C, H, W = x.shape
    out_h = (H + 2 * padding - k_h) // stride + 1
    out_w = (W + 2 * padding - k_w) // stride + 1
    img = jnp.pad(x, ((0, 0), (0, 0), (padding, padding), (padding, padding)))
    flat = img.reshape(-1)
    n = jnp.arange(N).reshape(N, 1, 1, 1, 1, 1)
    c = jnp.arange(C).reshape(1, C, 1, 1, 1, 1)
    oh = jnp.arange(out_h).reshape(1, 1, out_h, 1, 1, 1)
    ow = jnp.arange(out_w).reshape(1, 1, 1, out_w, 1, 1)
    kh = jnp.arange(k_h).reshape(1, 1, 1, 1, k_h, 1)
    kw = jnp.arange(k_w).reshape(1, 1, 1, 1, 1, k_w)
    idx = (n * C * H * W + c * H * W
           + oh * W * stride + ow * stride
           + kh * W * stride + kw * stride)
    A = flat[idx]
    x_tile = A.transpose(0, 2, 3, 1, 4, 5).reshape(N * out_h * out_w, C * k_h * k_w)
    return x_tile, out_h, out_w


if __name__ == "__main__":
    key = jax.random.PRNGKey(0)
    xkey, pkey = jax.random.split(key)

    # Small shapes consistent with the module: NCHW input.
    N, C, H, W = 2, 4, 16, 16
    out_c, ks = 8, (3, 3)
    x = jax.random.normal(xkey, (N, C, H, W), jnp.float32)

    module = MaskedConv2dPallas(C, out_c, ks, stride=1, padding=0, bias=True, key=pkey)

    out = jax.block_until_ready(module(x))

    # Sanity check against a plain-JAX reference of the same math.
    x_tile_ref, oh, ow = _torch_style_im2col_ref(x, ks[0], ks[1], 1, 0)
    x_tile_ref = x_tile_ref[:, np.nonzero(module.boolmask)[0]]
    ref = (x_tile_ref @ module.weight).reshape(N, oh * ow, out_c).transpose(0, 2, 1)
    ref = ref.reshape(N, out_c, oh, ow)
    np.testing.assert_allclose(np.asarray(out), np.asarray(ref), rtol=1e-4, atol=1e-4)

    assert out.shape == (N, out_c, H - 2, W - 2)
    print("KERNEL_OK")
</pallas_src>

<mosaic_0001>
module attributes {stable_mosaic.version = 11 : i64} {
  func.func @_fused_conv_kernel(%arg0: i32, %arg1: memref<2x8x384xf32, #tpu.memory_space<vmem>>, %arg2: memref<8x72xf32, #tpu.memory_space<vmem>>, %arg3: memref<2x8x256xf32, #tpu.memory_space<vmem>>) attributes {dimension_semantics = [#tpu.dimension_semantics<parallel>], iteration_bounds = array<i64: 1>, scalar_prefetch = 0 : i64, scratch_operands = 0 : i64, tpu.core_type = #tpu.core_type<tc>, window_params = [{transform_indices = @transform_0, window_bounds = array<i64: 2, 8, 384>}, {pipeline_mode = #tpu.pipeline_mode<synchronous>, transform_indices = @transform_1, window_bounds = array<i64: 8, 72>}, {transform_indices = @transform_2, window_bounds = array<i64: 2, 8, 256>}]} {
    %c0 = arith.constant 0 : index
    %c0_0 = arith.constant 0 : index
    %0 = vector.load %arg2[%c0, %c0_0] : memref<8x72xf32, #tpu.memory_space<vmem>>, vector<8x72xf32>
    %c0_1 = arith.constant 0 : index
    %c0_2 = arith.constant 0 : index
    %c0_3 = arith.constant 0 : index
    %1 = vector.load %arg1[%c0_1, %c0_2, %c0_3] : memref<2x8x384xf32, #tpu.memory_space<vmem>>, vector<1x8x256xf32>
    %2 = vector.shape_cast %1 : vector<1x8x256xf32> to vector<8x256xf32>
    %c0_4 = arith.constant 0 : index
    %c0_5 = arith.constant 0 : index
    %c1 = arith.constant 1 : index
    %3 = vector.load %arg1[%c0_4, %c0_5, %c1] : memref<2x8x384xf32, #tpu.memory_space<vmem>>, vector<1x8x256xf32>
    %4 = vector.shape_cast %3 : vector<1x8x256xf32> to vector<8x256xf32>
    %c0_6 = arith.constant 0 : index
    %c0_7 = arith.constant 0 : index
    %c2 = arith.constant 2 : index
    %5 = vector.load %arg1[%c0_6, %c0_7, %c2] : memref<2x8x384xf32, #tpu.memory_space<vmem>>, vector<1x8x256xf32>
    %6 = vector.shape_cast %5 : vector<1x8x256xf32> to vector<8x256xf32>
    %c0_8 = arith.constant 0 : index
    %c0_9 = arith.constant 0 : index
    %c16 = arith.constant 16 : index
    %7 = vector.load %arg1[%c0_8, %c0_9, %c16] : memref<2x8x384xf32, #tpu.memory_space<vmem>>, vector<1x8x256xf32>
    %8 = vector.shape_cast %7 : vector<1x8x256xf32> to vector<8x256xf32>
    %c0_10 = arith.constant 0 : index
    %c0_11 = arith.constant 0 : index
    %c17 = arith.constant 17 : index
    %9 = vector.load %arg1[%c0_10, %c0_11, %c17] : memref<2x8x384xf32, #tpu.memory_space<vmem>>, vector<1x8x256xf32>
    %10 = vector.shape_cast %9 : vector<1x8x256xf32> to vector<8x256xf32>
    %c0_12 = arith.constant 0 : index
    %c0_13 = arith.constant 0 : index
    %c18 = arith.constant 18 : index
    %11 = vector.load %arg1[%c0_12, %c0_13, %c18] : memref<2x8x384xf32, #tpu.memory_space<vmem>>, vector<1x8x256xf32>
    %12 = vector.shape_cast %11 : vector<1x8x256xf32> to vector<8x256xf32>
    %c0_14 = arith.constant 0 : index
    %c0_15 = arith.constant 0 : index
    %c32 = arith.constant 32 : index
    %13 = vector.load %arg1[%c0_14, %c0_15, %c32] : memref<2x8x384xf32, #tpu.memory_space<vmem>>, vector<1x8x256xf32>
    %14 = vector.shape_cast %13 : vector<1x8x256xf32> to vector<8x256xf32>
    %c0_16 = arith.constant 0 : index
    %c0_17 = arith.constant 0 : index
    %c33 = arith.constant 33 : index
    %15 = vector.load %arg1[%c0_16, %c0_17, %c33] : memref<2x8x384xf32, #tpu.memory_space<vmem>>, vector<1x8x256xf32>
    %16 = vector.shape_cast %15 : vector<1x8x256xf32> to vector<8x256xf32>
    %c0_18 = arith.constant 0 : index
    %c0_19 = arith.constant 0 : index
    %c34 = arith.constant 34 : index
    %17 = vector.load %arg1[%c0_18, %c0_19, %c34] : memref<2x8x384xf32, #tpu.memory_space<vmem>>, vector<1x8x256xf32>
    %18 = vector.shape_cast %17 : vector<1x8x256xf32> to vector<8x256xf32>
    %19 = tpu.concatenate %2, %4, %6, %8, %10, %12, %14, %16, %18 in 0 : vector<8x256xf32>, vector<8x256xf32>, vector<8x256xf32>, vector<8x256xf32>, vector<8x256xf32>, vector<8x256xf32>, vector<8x256xf32>, vector<8x256xf32>, vector<8x256xf32> -> vector<72x256xf32>
    %cst = arith.constant dense<0.000000e+00> : vector<8x256xf32>
    %20 = tpu.matmul %0, %19, %cst {dimension_numbers = #tpu.dot_dimension_numbers<[1], [0], [0], [1], [0, 0, 1, 1], [], []>} : vector<8x72xf32>, vector<72x256xf32>, vector<8x256xf32> -> vector<8x256xf32>
    %c0_20 = arith.constant 0 : index
    %c0_21 = arith.constant 0 : index
    %c0_22 = arith.constant 0 : index
    %21 = vector.load %arg3[%c0_20, %c0_21, %c0_22] : memref<2x8x256xf32, #tpu.memory_space<vmem>>, vector<1x8x256xf32>
    %22 = vector.shape_cast %21 : vector<1x8x256xf32> to vector<8x256xf32>
    %23 = vector.shape_cast %20 : vector<8x256xf32> to vector<1x8x256xf32>
    tpu.vector_store %arg3[%c0_20, %c0_21, %c0_22], %23 {strides = array<i32>} : memref<2x8x256xf32, #tpu.memory_space<vmem>>, vector<1x8x256xf32>,
    %c1_23 = arith.constant 1 : index
    %c0_24 = arith.constant 0 : index
    %c0_25 = arith.constant 0 : index
    %24 = vector.load %arg1[%c1_23, %c0_24, %c0_25] : memref<2x8x384xf32, #tpu.memory_space<vmem>>, vector<1x8x256xf32>
    %25 = vector.shape_cast %24 : vector<1x8x256xf32> to vector<8x256xf32>
    %c1_26 = arith.constant 1 : index
    %c0_27 = arith.constant 0 : index
    %c1_28 = arith.constant 1 : index
    %26 = vector.load %arg1[%c1_26, %c0_27, %c1_28] : memref<2x8x384xf32, #tpu.memory_space<vmem>>, vector<1x8x256xf32>
    %27 = vector.shape_cast %26 : vector<1x8x256xf32> to vector<8x256xf32>
    %c1_29 = arith.constant 1 : index
    %c0_30 = arith.constant 0 : index
    %c2_31 = arith.constant 2 : index
    %28 = vector.load %arg1[%c1_29, %c0_30, %c2_31] : memref<2x8x384xf32, #tpu.memory_space<vmem>>, vector<1x8x256xf32>
    %29 = vector.shape_cast %28 : vector<1x8x256xf32> to vector<8x256xf32>
    %c1_32 = arith.constant 1 : index
    %c0_33 = arith.constant 0 : index
    %c16_34 = arith.constant 16 : index
    %30 = vector.load %arg1[%c1_32, %c0_33, %c16_34] : memref<2x8x384xf32, #tpu.memory_space<vmem>>, vector<1x8x256xf32>
    %31 = vector.shape_cast %30 : vector<1x8x256xf32> to vector<8x256xf32>
    %c1_35 = arith.constant 1 : index
    %c0_36 = arith.constant 0 : index
    %c17_37 = arith.constant 17 : index
    %32 = vector.load %arg1[%c1_35, %c0_36, %c17_37] : memref<2x8x384xf32, #tpu.memory_space<vmem>>, vector<1x8x256xf32>
    %33 = vector.shape_cast %32 : vector<1x8x256xf32> to vector<8x256xf32>
    %c1_38 = arith.constant 1 : index
    %c0_39 = arith.constant 0 : index
    %c18_40 = arith.constant 18 : index
    %34 = vector.load %arg1[%c1_38, %c0_39, %c18_40] : memref<2x8x384xf32, #tpu.memory_space<vmem>>, vector<1x8x256xf32>
    %35 = vector.shape_cast %34 : vector<1x8x256xf32> to vector<8x256xf32>
    %c1_41 = arith.constant 1 : index
    %c0_42 = arith.constant 0 : index
    %c32_43 = arith.constant 32 : index
    %36 = vector.load %arg1[%c1_41, %c0_42, %c32_43] : memref<2x8x384xf32, #tpu.memory_space<vmem>>, vector<1x8x256xf32>
    %37 = vector.shape_cast %36 : vector<1x8x256xf32> to vector<8x256xf32>
    %c1_44 = arith.constant 1 : index
    %c0_45 = arith.constant 0 : index
    %c33_46 = arith.constant 33 : index
    %38 = vector.load %arg1[%c1_44, %c0_45, %c33_46] : memref<2x8x384xf32, #tpu.memory_space<vmem>>, vector<1x8x256xf32>
    %39 = vector.shape_cast %38 : vector<1x8x256xf32> to vector<8x256xf32>
    %c1_47 = arith.constant 1 : index
    %c0_48 = arith.constant 0 : index
    %c34_49 = arith.constant 34 : index
    %40 = vector.load %arg1[%c1_47, %c0_48, %c34_49] : memref<2x8x384xf32, #tpu.memory_space<vmem>>, vector<1x8x256xf32>
    %41 = vector.shape_cast %40 : vector<1x8x256xf32> to vector<8x256xf32>
    %42 = tpu.concatenate %25, %27, %29, %31, %33, %35, %37, %39, %41 in 0 : vector<8x256xf32>, vector<8x256xf32>, vector<8x256xf32>, vector<8x256xf32>, vector<8x256xf32>, vector<8x256xf32>, vector<8x256xf32>, vector<8x256xf32>, vector<8x256xf32> -> vector<72x256xf32>
    %cst_50 = arith.constant dense<0.000000e+00> : vector<8x256xf32>
    %43 = tpu.matmul %0, %42, %cst_50 {dimension_numbers = #tpu.dot_dimension_numbers<[1], [0], [0], [1], [0, 0, 1, 1], [], []>} : vector<8x72xf32>, vector<72x256xf32>, vector<8x256xf32> -> vector<8x256xf32>
    %c1_51 = arith.constant 1 : index
    %c0_52 = arith.constant 0 : index
    %c0_53 = arith.constant 0 : index
    %44 = vector.load %arg3[%c1_51, %c0_52, %c0_53] : memref<2x8x256xf32, #tpu.memory_space<vmem>>, vector<1x8x256xf32>
    %45 = vector.shape_cast %44 : vector<1x8x256xf32> to vector<8x256xf32>
    %46 = vector.shape_cast %43 : vector<8x256xf32> to vector<1x8x256xf32>
    tpu.vector_store %arg3[%c1_51, %c0_52, %c0_53], %46 {strides = array<i32>} : memref<2x8x256xf32, #tpu.memory_space<vmem>>, vector<1x8x256xf32>,
    return
  }
  func.func @transform_0(%arg0: i32) -> (i32, i32, i32) {
    %c0_i32 = arith.constant 0 : i32
    %c0_i32_0 = arith.constant 0 : i32
    %c0_i32_1 = arith.constant 0 : i32
    return %arg0, %c0_i32, %c0_i32_0 : i32, i32, i32
  }
  func.func @transform_1(%arg0: i32) -> (i32, i32) {
    %c0_i32 = arith.constant 0 : i32
    %c0_i32_0 = arith.constant 0 : i32
    %c0_i32_1 = arith.constant 0 : i32
    return %c0_i32, %c0_i32_0 : i32, i32
  }
  func.func @transform_2(%arg0: i32) -> (i32, i32, i32) {
    %c0_i32 = arith.constant 0 : i32
    %c0_i32_0 = arith.constant 0 : i32
    %c0_i32_1 = arith.constant 0 : i32
    return %arg0, %c0_i32, %c0_i32_0 : i32, i32, i32
  }
}

</mosaic_0001>

<llo_original>
// kernel: _forward_impl.1
$region0: #{_forward_impl.1}
  #allocation0 [shape = 'u32[]', space=smem, size = 0x4, offset = 0x4, fixed_abs, tag = 'smem constant byte address 0x4 - core index']
  #allocation1 [shape = 'u32[144,128]{1,0:T(1,128)}', space=vmem, size = 0x12000, scoped, tag = 'internal scratch']
  %s0 = inlined_call_operand.vmem [shape: f32[2,8,384], index: 0, kind: input, shape index: {}]
  %s1 = inlined_call_operand.vmem [shape: f32[8,72], index: 1, kind: input, shape index: {}]
  %s2 = inlined_call_operand.vmem [shape: f32[2,8,256], index: 2, kind: output, shape index: {}]
  %s3 = sld [smem:[#allocation0]]
  $region18: #{_forward_impl.1} parent=0
    _
  %s5 = ssub.s32 1, %s3
  %s6 = scalar_select 0, %s5, %s3
  // Predicated region
  $region2: #{_forward_impl.1} parent=0 // pred_check
    _
  $region3: #{_forward_impl.1} parent=0 // pred_check_branch
    %8 = sbr.rel (0) target = $region5
  $region4: #{_forward_impl.1} parent=0 // pred_region
    _
  $region5: #{_forward_impl.1} parent=0 // pred_fallthru
    _
  // Predicated region
  $region6: #{_forward_impl.1} parent=0 // pred_check
    _
  $region7: #{_forward_impl.1} parent=0 // pred_check_branch
    %10 = sbr.rel (0) target = $region9
  $region8: #{_forward_impl.1} parent=0 // pred_region
    _
  $region9: #{_forward_impl.1} parent=0 // pred_fallthru
    _
  %v11 = vld [vmem:[%s1] sm:$0xff]
  %v12 = vld [vmem:[%s0] sm:$0xff]
  %v13 = vld [vmem:[%s0 + $0x8] sm:$0xff]
  %v14 = vld [vmem:[%s0 + $0x10] sm:$0xff]
  %18 = vrot.lane.b32.xlu0 %v12, 127
  %v19 = vpop.permute.xlu0 %18
  %20 = vrot.lane.b32.xlu0 %v13, 127
  %v21 = vpop.permute.xlu0 %20
  %22 = vrot.lane.b32.xlu0 %v14, 127
  %v23 = vpop.permute.xlu0 %22
  %vm24 = vcmask 1039360
  %v25 = vsel %vm24, %v19, %v21
  %v26 = vsel %vm24, %v21, %v23
  %29 = vrot.lane.b32.xlu0 %v12, 126
  %v30 = vpop.permute.xlu0 %29
  %31 = vrot.lane.b32.xlu0 %v13, 126
  %v32 = vpop.permute.xlu0 %31
  %33 = vrot.lane.b32.xlu0 %v14, 126
  %v34 = vpop.permute.xlu0 %33
  %vm35 = vcmask 1031168
  %v36 = vsel %vm35, %v30, %v32
  %v37 = vsel %vm35, %v32, %v34
  %40 = vrot.lane.b32.xlu0 %v12, 112
  %v41 = vpop.permute.xlu0 %40
  %42 = vrot.lane.b32.xlu0 %v13, 112
  %v43 = vpop.permute.xlu0 %42
  %44 = vrot.lane.b32.xlu0 %v14, 112
  %v45 = vpop.permute.xlu0 %44
  %vm46 = vcmask 916480
  %v47 = vsel %vm46, %v41, %v43
  %v48 = vsel %vm46, %v43, %v45
  %51 = vrot.lane.b32.xlu0 %v12, 111
  %v52 = vpop.permute.xlu0 %51
  %53 = vrot.lane.b32.xlu0 %v13, 111
  %v54 = vpop.permute.xlu0 %53
  %55 = vrot.lane.b32.xlu0 %v14, 111
  %v56 = vpop.permute.xlu0 %55
  %vm57 = vcmask 908288
  %v58 = vsel %vm57, %v52, %v54
  %v59 = vsel %vm57, %v54, %v56
  %62 = vrot.lane.b32.xlu0 %v12, 110
  %v63 = vpop.permute.xlu0 %62
  %64 = vrot.lane.b32.xlu0 %v13, 110
  %v65 = vpop.permute.xlu0 %64
  %66 = vrot.lane.b32.xlu0 %v14, 110
  %v67 = vpop.permute.xlu0 %66
  %vm68 = vcmask 900096
  %v69 = vsel %vm68, %v63, %v65
  %v70 = vsel %vm68, %v65, %v67
  %73 = vrot.lane.b32.xlu0 %v12, 96
  %v74 = vpop.permute.xlu0 %73
  %75 = vrot.lane.b32.xlu0 %v13, 96
  %v76 = vpop.permute.xlu0 %75
  %77 = vrot.lane.b32.xlu0 %v14, 96
  %v78 = vpop.permute.xlu0 %77
  %vm79 = vcmask 785408
  %v80 = vsel %vm79, %v74, %v76
  %v81 = vsel %vm79, %v76, %v78
  %84 = vrot.lane.b32.xlu0 %v12, 95
  %v85 = vpop.permute.xlu0 %84
  %86 = vrot.lane.b32.xlu0 %v13, 95
  %v87 = vpop.permute.xlu0 %86
  %88 = vrot.lane.b32.xlu0 %v14, 95
  %v89 = vpop.permute.xlu0 %88
  %vm90 = vcmask 777216
  %v91 = vsel %vm90, %v85, %v87
  %v92 = vsel %vm90, %v87, %v89
  %95 = vrot.lane.b32.xlu0 %v12, 94
  %v96 = vpop.permute.xlu0 %95
  %97 = vrot.lane.b32.xlu0 %v13, 94
  %v98 = vpop.permute.xlu0 %97
  %99 = vrot.lane.b32.xlu0 %v14, 94
  %v100 = vpop.permute.xlu0 %99
  %vm101 = vcmask 769024
  %v102 = vsel %vm101, %v96, %v98
  %v103 = vsel %vm101, %v98, %v100
  %vm106 = vcmask 588800
  %v108 = vsel %vm106, %v11, 0
  %110 = vmatprep.subr.mxu0 0.0
  %111 = vmatpush1.msra.mxu0 0.0
  %112 = vmatprep.subr.mxu0 0.0
  %113 = vmatpush1.msra.mxu0 0.0
  %114 = vmatprep.subr.mxu0 0.0
  %115 = vmatpush1.msra.mxu0 0.0
  %116 = vmatprep.subr.mxu0 0.0
  %117 = vmatpush1.msra.mxu0 0.0
  %118 = vmatprep.subr.mxu0 0.0
  %119 = vmatpush1.msra.mxu0 0.0
  %120 = vmatprep.subr.mxu0 0.0
  %121 = vmatpush1.msra.mxu0 0.0
  %122 = vmatprep.subr.mxu0 0.0
  %123 = vmatpush1.msra.mxu0 0.0
  %124 = vmatprep.subr.mxu0 %v103
  %125 = vmatpush1.msra.mxu0 %v102
  %126 = vmatprep.subr.mxu0 %v92
  %127 = vmatpush1.msra.mxu0 %v91
  %128 = vmatprep.subr.mxu0 %v81
  %129 = vmatpush1.msra.mxu0 %v80
  %130 = vmatprep.subr.mxu0 %v70
  %131 = vmatpush1.msra.mxu0 %v69
  %132 = vmatprep.subr.mxu0 %v59
  %133 = vmatpush1.msra.mxu0 %v58
  %134 = vmatprep.subr.mxu0 %v48
  %135 = vmatpush1.msra.mxu0 %v47
  %136 = vmatprep.subr.mxu0 %v37
  %137 = vmatpush1.msra.mxu0 %v36
  %138 = vmatprep.subr.mxu0 %v26
  %139 = vmatpush1.msra.mxu0 %v25
  %140 = vmatprep.subr.mxu0 %v13
  %141 = vmatpush1.msra.mxu0 %v12
  %142 = vmatprep.subr.mxu0 0.0
  %143 = vmatpush2.msra.mxu0 0.0
  %144 = vmatprep.subr.mxu0 0.0
  %145 = vmatpush2.msra.mxu0 0.0
  %146 = vmatprep.subr.mxu0 0.0
  %147 = vmatpush2.msra.mxu0 0.0
  %148 = vmatprep.subr.mxu0 0.0
  %149 = vmatpush2.msra.mxu0 0.0
  %150 = vmatprep.subr.mxu0 0.0
  %151 = vmatpush2.msra.mxu0 0.0
  %152 = vmatprep.subr.mxu0 0.0
  %153 = vmatpush2.msra.mxu0 0.0
  %154 = vmatprep.subr.mxu0 0.0
  %155 = vmatpush2.msra.mxu0 0.0
  %156 = vmatprep.subr.mxu0 0.0
  %157 = vmatpush2.msra.mxu0 0.0
  %158 = vmatprep.subr.mxu0 0.0
  %159 = vmatpush2.msra.mxu0 0.0
  %160 = vmatprep.subr.mxu0 0.0
  %161 = vmatpush2.msra.mxu0 0.0
  %162 = vmatprep.subr.mxu0 0.0
  %163 = vmatpush2.msra.mxu0 0.0
  %164 = vmatprep.subr.mxu0 0.0
  %165 = vmatpush2.msra.mxu0 0.0
  %166 = vmatprep.subr.mxu0 0.0
  %167 = vmatpush2.msra.mxu0 0.0
  %168 = vmatprep.subr.mxu0 0.0
  %169 = vmatpush2.msra.mxu0 0.0
  %170 = vmatprep.subr.mxu0 0.0
  %171 = vmatpush2.msra.mxu0 0.0
  %172 = vmatprep.subr.mxu0 0.0
  %173 = vmatpush2.msra.mxu0 0.0
  %174 = vmatprep.mubr.f32.mxu0 0.0
  %175 = vmatmul.mubr.f32.gmra.mxu0 %v108
  %v176 = vpop.f32.mrf.mxu0
  %v177 = vadd.f32 0.0, %v176
  %v178 = vpop.f32.mrf.mxu0
  %v179 = vadd.f32 0.0, %v178
  %180 = vdwg.mxu0
  %181 = vst [vmem:[%s2] sm:$0xff] %v177
  %182 = vst [vmem:[%s2 + $0x8] sm:$0xff] %v179
  %s183 = scalar_lea.vmem %s0, 24
  %v184 = vld [vmem:[%s183] sm:$0xff]
  %v185 = vld [vmem:[%s183 + $0x8] sm:$0xff]
  %v186 = vld [vmem:[%s183 + $0x10] sm:$0xff]
  %190 = vrot.lane.b32.xlu0 %v184, 127
  %v191 = vpop.permute.xlu0 %190
  %192 = vrot.lane.b32.xlu0 %v185, 127
  %v193 = vpop.permute.xlu0 %192
  %194 = vrot.lane.b32.xlu0 %v186, 127
  %v195 = vpop.permute.xlu0 %194
  %v196 = vsel %vm24, %v191, %v193
  %v197 = vsel %vm24, %v193, %v195
  %200 = vrot.lane.b32.xlu0 %v184, 126
  %v201 = vpop.permute.xlu0 %200
  %202 = vrot.lane.b32.xlu0 %v185, 126
  %v203 = vpop.permute.xlu0 %202
  %204 = vrot.lane.b32.xlu0 %v186, 126
  %v205 = vpop.permute.xlu0 %204
  %v206 = vsel %vm35, %v201, %v203
  %v207 = vsel %vm35, %v203, %v205
  %210 = vrot.lane.b32.xlu0 %v184, 112
  %v211 = vpop.permute.xlu0 %210
  %212 = vrot.lane.b32.xlu0 %v185, 112
  %v213 = vpop.permute.xlu0 %212
  %214 = vrot.lane.b32.xlu0 %v186, 112
  %v215 = vpop.permute.xlu0 %214
  %v216 = vsel %vm46, %v211, %v213
  %v217 = vsel %vm46, %v213, %v215
  %220 = vrot.lane.b32.xlu0 %v184, 111
  %v221 = vpop.permute.xlu0 %220
  %222 = vrot.lane.b32.xlu0 %v185, 111
  %v223 = vpop.permute.xlu0 %222
  %224 = vrot.lane.b32.xlu0 %v186, 111
  %v225 = vpop.permute.xlu0 %224
  %v226 = vsel %vm57, %v221, %v223
  %v227 = vsel %vm57, %v223, %v225
  %230 = vrot.lane.b32.xlu0 %v184, 110
  %v231 = vpop.permute.xlu0 %230
  %232 = vrot.lane.b32.xlu0 %v185, 110
  %v233 = vpop.permute.xlu0 %232
  %234 = vrot.lane.b32.xlu0 %v186, 110
  %v235 = vpop.permute.xlu0 %234
  %v236 = vsel %vm68, %v231, %v233
  %v237 = vsel %vm68, %v233, %v235
  %240 = vrot.lane.b32.xlu0 %v184, 96
  %v241 = vpop.permute.xlu0 %240
  %242 = vrot.lane.b32.xlu0 %v185, 96
  %v243 = vpop.permute.xlu0 %242
  %244 = vrot.lane.b32.xlu0 %v186, 96
  %v245 = vpop.permute.xlu0 %244
  %v246 = vsel %vm79, %v241, %v243
  %v247 = vsel %vm79, %v243, %v245
  %250 = vrot.lane.b32.xlu0 %v184, 95
  %v251 = vpop.permute.xlu0 %250
  %252 = vrot.lane.b32.xlu0 %v185, 95
  %v253 = vpop.permute.xlu0 %252
  %254 = vrot.lane.b32.xlu0 %v186, 95
  %v255 = vpop.permute.xlu0 %254
  %v256 = vsel %vm90, %v251, %v253
  %v257 = vsel %vm90, %v253, %v255
  %260 = vrot.lane.b32.xlu0 %v184, 94
  %v261 = vpop.permute.xlu0 %260
  %262 = vrot.lane.b32.xlu0 %v185, 94
  %v263 = vpop.permute.xlu0 %262
  %264 = vrot.lane.b32.xlu0 %v186, 94
  %v265 = vpop.permute.xlu0 %264
  %v266 = vsel %vm101, %v261, %v263
  %v267 = vsel %vm101, %v263, %v265
  %270 = vmatprep.subr.mxu0 0.0
  %271 = vmatpush1.msra.mxu0 0.0
  %272 = vmatprep.subr.mxu0 0.0
  %273 = vmatpush1.msra.mxu0 0.0
  %274 = vmatprep.subr.mxu0 0.0
  %275 = vmatpush1.msra.mxu0 0.0
  %276 = vmatprep.subr.mxu0 0.0
  %277 = vmatpush1.msra.mxu0 0.0
  %278 = vmatprep.subr.mxu0 0.0
  %279 = vmatpush1.msra.mxu0 0.0
  %280 = vmatprep.subr.mxu0 0.0
  %281 = vmatpush1.msra.mxu0 0.0
  %282 = vmatprep.subr.mxu0 0.0
  %283 = vmatpush1.msra.mxu0 0.0
  %284 = vmatprep.subr.mxu0 %v267
  %285 = vmatpush1.msra.mxu0 %v266
  %286 = vmatprep.subr.mxu0 %v257
  %287 = vmatpush1.msra.mxu0 %v256
  %288 = vmatprep.subr.mxu0 %v247
  %289 = vmatpush1.msra.mxu0 %v246
  %290 = vmatprep.subr.mxu0 %v237
  %291 = vmatpush1.msra.mxu0 %v236
  %292 = vmatprep.subr.mxu0 %v227
  %293 = vmatpush1.msra.mxu0 %v226
  %294 = vmatprep.subr.mxu0 %v217
  %295 = vmatpush1.msra.mxu0 %v216
  %296 = vmatprep.subr.mxu0 %v207
  %297 = vmatpush1.msra.mxu0 %v206
  %298 = vmatprep.subr.mxu0 %v197
  %299 = vmatpush1.msra.mxu0 %v196
  %300 = vmatprep.subr.mxu0 %v185
  %301 = vmatpush1.msra.mxu0 %v184
  %302 = vmatprep.subr.mxu0 0.0
  %303 = vmatpush2.msra.mxu0 0.0
  %304 = vmatprep.subr.mxu0 0.0
  %305 = vmatpush2.msra.mxu0 0.0
  %306 = vmatprep.subr.mxu0 0.0
  %307 = vmatpush2.msra.mxu0 0.0
  %308 = vmatprep.subr.mxu0 0.0
  %309 = vmatpush2.msra.mxu0 0.0
  %310 = vmatprep.subr.mxu0 0.0
  %311 = vmatpush2.msra.mxu0 0.0
  %312 = vmatprep.subr.mxu0 0.0
  %313 = vmatpush2.msra.mxu0 0.0
  %314 = vmatprep.subr.mxu0 0.0
  %315 = vmatpush2.msra.mxu0 0.0
  %316 = vmatprep.subr.mxu0 0.0
  %317 = vmatpush2.msra.mxu0 0.0
  %318 = vmatprep.subr.mxu0 0.0
  %319 = vmatpush2.msra.mxu0 0.0
  %320 = vmatprep.subr.mxu0 0.0
  %321 = vmatpush2.msra.mxu0 0.0
  %322 = vmatprep.subr.mxu0 0.0
  %323 = vmatpush2.msra.mxu0 0.0
  %324 = vmatprep.subr.mxu0 0.0
  %325 = vmatpush2.msra.mxu0 0.0
  %326 = vmatprep.subr.mxu0 0.0
  %327 = vmatpush2.msra.mxu0 0.0
  %328 = vmatprep.subr.mxu0 0.0
  %329 = vmatpush2.msra.mxu0 0.0
  %330 = vmatprep.subr.mxu0 0.0
  %331 = vmatpush2.msra.mxu0 0.0
  %332 = vmatprep.subr.mxu0 0.0
  %333 = vmatpush2.msra.mxu0 0.0
  %334 = vmatprep.mubr.f32.mxu0 0.0
  %335 = vmatmul.mubr.f32.gmra.mxu0 %v108
  %v336 = vpop.f32.mrf.mxu0
  %v337 = vadd.f32 0.0, %v336
  %v338 = vpop.f32.mrf.mxu0
  %v339 = vadd.f32 0.0, %v338
  %340 = vdwg.mxu0
  %s341 = scalar_lea.vmem %s2, 16
  %342 = vst [vmem:[%s341] sm:$0xff] %v337
  %343 = vst [vmem:[%s341 + $0x8] sm:$0xff] %v339
  // Predicated region
  $region10: #{_forward_impl.1} parent=0 // pred_check
    _
  $region11: #{_forward_impl.1} parent=0 // pred_check_branch
    %345 = sbr.rel (0) target = $region13
  $region12: #{_forward_impl.1} parent=0 // pred_region
    _
  $region13: #{_forward_impl.1} parent=0 // pred_fallthru
    _
  // Predicated region
  $region14: #{_forward_impl.1} parent=0 // pred_check
    _
  $region15: #{_forward_impl.1} parent=0 // pred_check_branch
    %347 = sbr.rel (0) target = $region17
  $region16: #{_forward_impl.1} parent=0 // pred_region
    _
  $region17: #{_forward_impl.1} parent=0 // pred_fallthru
    _

</llo_original>
